<compile_context>
chip_gen: v6e
topology: v6e:2x2x1
jax: 0.10.0
libtpu: 0.0.40
codegen_flags: <defaults>
</compile_context>

<pallas_src>
import jax
import jax.numpy as jnp
from jax.experimental import pallas as pl
from jax.experimental.pallas import tpu as pltpu

LANE = 128


def _round_up(n, m=LANE):
    return ((n + m - 1) // m) * m


def d3qn_kernel(x_ref, w1_ref, b1_ref, w2_ref, b2_ref, wq_ref, bq_ref, q_ref):
    """One batch tile: fc1 -> relu -> fc2 -> relu -> folded dueling head -> Q."""
    x = x_ref[...]                                    # bf16, real state_dim width

    # fc1 + ReLU  (bf16 matmul, f32 accumulate)
    h1 = jnp.dot(x, w1_ref[...], preferred_element_type=jnp.float32) + b1_ref[...]
    h1 = jnp.maximum(h1, 0.0).astype(jnp.bfloat16)

    # fc2 + ReLU
    h2 = jnp.dot(h1, w2_ref[...], preferred_element_type=jnp.float32) + b2_ref[...]
    h2 = jnp.maximum(h2, 0.0).astype(jnp.bfloat16)

    # Folded dueling head: Q = h2 @ w_q + b_q  (V + A - mean(A) already baked in).
    q = jnp.dot(h2, wq_ref[...], preferred_element_type=jnp.float32) + bq_ref[...]
    q_ref[...] = q.astype(q_ref.dtype)


def pack_params(p):
    """Fold the dueling combine into the head, pad lane dims, cast to bf16."""
    sd, f1 = p["w1"].shape
    _, f2 = p["w2"].shape
    ad = p["wa"].shape[1]
    f1p, f2p, adp = _round_up(f1), _round_up(f2), _round_up(ad)

    # Exact algebraic fold (done in f32, then cast):
    #   Q_j = h2 @ (wv + wa_j - mean_k wa_k) + (bv + ba_j - mean_k ba_k)
    wq = p["wv"] + p["wa"] - jnp.mean(p["wa"], axis=1, keepdims=True)   # [f2, ad]
    bq = p["bv"] + p["ba"] - jnp.mean(p["ba"], axis=1, keepdims=True)   # [1, ad]

    def pad(a, shape):
        return jnp.zeros(shape, a.dtype).at[:a.shape[0], :a.shape[1]].set(a)

    packed = dict(
        w1=pad(p["w1"], (sd, f1p)).astype(jnp.bfloat16),   # K stays at real state_dim
        b1=pad(p["b1"], (1, f1p)),
        w2=pad(p["w2"], (f1p, f2p)).astype(jnp.bfloat16),
        b2=pad(p["b2"], (1, f2p)),
        wq=pad(wq, (f2p, adp)).astype(jnp.bfloat16),
        bq=pad(bq, (1, adp)),
    )
    dims = dict(state_dim=sd, action_dim=ad, f1p=f1p, f2p=f2p, adp=adp)
    return packed, dims


def dueling_dqn_forward(state, packed, dims, *, tb_max=1024):
    """state: [B, state_dim] f32. Returns Q: [B, action_dim] bf16."""
    B = state.shape[0]
    sd, ad = dims["state_dim"], dims["action_dim"]
    f1p, f2p, adp = dims["f1p"], dims["f2p"], dims["adp"]

    # Batch tile: large (amortize per-step overhead) but clamped so small
    # batches stay a single tile; pad batch only up to a whole tile count.
    tb = min(tb_max, _round_up(B, LANE))
    bp = _round_up(B, tb)

    x = state.astype(jnp.bfloat16)                     # bf16 input, real width
    if bp != B:
        x = jnp.pad(x, ((0, bp - B), (0, 0)))

    const = lambda i: (0, 0)   # weights/biases: same block every step (VMEM-resident)

    q_pad = pl.pallas_call(
        d3qn_kernel,
        out_shape=jax.ShapeDtypeStruct((bp, adp), jnp.bfloat16),
        grid=(bp // tb,),
        in_specs=[
            pl.BlockSpec((tb, sd), lambda i: (i, 0)),    # state tile streams over batch
            pl.BlockSpec((sd, f1p), const),              # w1
            pl.BlockSpec((1, f1p), const),               # b1
            pl.BlockSpec((f1p, f2p), const),             # w2
            pl.BlockSpec((1, f2p), const),               # b2
            pl.BlockSpec((f2p, adp), const),             # folded head weight
            pl.BlockSpec((1, adp), const),               # folded head bias
        ],
        out_specs=pl.BlockSpec((tb, adp), lambda i: (i, 0)),
        compiler_params=pltpu.CompilerParams(
            dimension_semantics=("parallel",),
        ),
    )(x, packed["w1"], packed["b1"], packed["w2"], packed["b2"],
      packed["wq"], packed["bq"])

    # Real Q values live in columns 0 .. action_dim-1.
    return q_pad[:B, :ad]


def init_params(key, state_dim, action_dim, fc1_dim, fc2_dim):
    """Deterministic init mirroring nn.Linear shapes (weights as [in, out], f32)."""
    ks = jax.random.split(key, 8)

    def linear(kw, kb, fan_in, fan_out):
        bound = 1.0 / jnp.sqrt(jnp.float32(fan_in))
        w = jax.random.uniform(kw, (fan_in, fan_out), jnp.float32, -bound, bound)
        b = jax.random.uniform(kb, (1, fan_out), jnp.float32, -bound, bound)
        return w, b

    w1, b1 = linear(ks[0], ks[1], state_dim, fc1_dim)
    w2, b2 = linear(ks[2], ks[3], fc1_dim, fc2_dim)
    wv, bv = linear(ks[4], ks[5], fc2_dim, 1)
    wa, ba = linear(ks[6], ks[7], fc2_dim, action_dim)
    return dict(w1=w1, b1=b1, w2=w2, b2=b2, wv=wv, bv=bv, wa=wa, ba=ba)


def reference_forward(state, p):
    h1 = jnp.maximum(state @ p["w1"] + p["b1"], 0.0)
    h2 = jnp.maximum(h1 @ p["w2"] + p["b2"], 0.0)
    v = h2 @ p["wv"] + p["bv"]
    a = h2 @ p["wa"] + p["ba"]
    return v + a - jnp.mean(a, axis=-1, keepdims=True)


if __name__ == "__main__":
    key = jax.random.PRNGKey(0)
    k_state, k_params = jax.random.split(key)

    batch, state_dim, action_dim, fc1_dim, fc2_dim = 8, 16, 4, 64, 64

    state = jax.random.normal(k_state, (batch, state_dim), jnp.float32)
    params = init_params(k_params, state_dim, action_dim, fc1_dim, fc2_dim)
    packed, dims = pack_params(params)

    q = dueling_dqn_forward(state, packed, dims)
    q = jax.block_until_ready(q)

    q_ref = reference_forward(state, params)
    assert q.shape == (batch, action_dim)
    # bf16 matmul inputs / bf16 output with f32 accumulation -> loose tolerance.
    max_err = float(jnp.max(jnp.abs(q.astype(jnp.float32) - q_ref)))
    assert max_err < 5e-2, f"max abs error {max_err}"

    print("KERNEL_OK")
</pallas_src>

<mosaic_0001>
module attributes {stable_mosaic.version = 11 : i64} {
  func.func @d3qn_kernel(%arg0: i32, %arg1: memref<128x16xbf16, #tpu.memory_space<vmem>>, %arg2: memref<16x128xbf16, #tpu.memory_space<vmem>>, %arg3: memref<1x128xf32, #tpu.memory_space<vmem>>, %arg4: memref<128x128xbf16, #tpu.memory_space<vmem>>, %arg5: memref<1x128xf32, #tpu.memory_space<vmem>>, %arg6: memref<128x128xbf16, #tpu.memory_space<vmem>>, %arg7: memref<1x128xf32, #tpu.memory_space<vmem>>, %arg8: memref<128x128xbf16, #tpu.memory_space<vmem>>) attributes {dimension_semantics = [#tpu.dimension_semantics<parallel>], iteration_bounds = array<i64: 1>, scalar_prefetch = 0 : i64, scratch_operands = 0 : i64, tpu.core_type = #tpu.core_type<tc>, window_params = [{transform_indices = @transform_0, window_bounds = array<i64: 128, 16>}, {pipeline_mode = #tpu.pipeline_mode<synchronous>, transform_indices = @transform_1, window_bounds = array<i64: 16, 128>}, {pipeline_mode = #tpu.pipeline_mode<synchronous>, transform_indices = @transform_2, window_bounds = array<i64: 1, 128>}, {pipeline_mode = #tpu.pipeline_mode<synchronous>, transform_indices = @transform_3, window_bounds = array<i64: 128, 128>}, {pipeline_mode = #tpu.pipeline_mode<synchronous>, transform_indices = @transform_4, window_bounds = array<i64: 1, 128>}, {pipeline_mode = #tpu.pipeline_mode<synchronous>, transform_indices = @transform_5, window_bounds = array<i64: 128, 128>}, {pipeline_mode = #tpu.pipeline_mode<synchronous>, transform_indices = @transform_6, window_bounds = array<i64: 1, 128>}, {transform_indices = @transform_7, window_bounds = array<i64: 128, 128>}]} {
    %c0 = arith.constant 0 : index
    %c0_0 = arith.constant 0 : index
    %0 = vector.load %arg1[%c0, %c0_0] : memref<128x16xbf16, #tpu.memory_space<vmem>>, vector<128x16xbf16>
    %c0_1 = arith.constant 0 : index
    %c0_2 = arith.constant 0 : index
    %1 = vector.load %arg2[%c0_1, %c0_2] : memref<16x128xbf16, #tpu.memory_space<vmem>>, vector<16x128xbf16>
    %cst = arith.constant dense<0.000000e+00> : vector<128x128xf32>
    %2 = tpu.matmul %0, %1, %cst {dimension_numbers = #tpu.dot_dimension_numbers<[1], [0], [0], [1], [0, 0, 1, 1], [], []>} : vector<128x16xbf16>, vector<16x128xbf16>, vector<128x128xf32> -> vector<128x128xf32>
    %c0_3 = arith.constant 0 : index
    %c0_4 = arith.constant 0 : index
    %3 = vector.load %arg3[%c0_3, %c0_4] : memref<1x128xf32, #tpu.memory_space<vmem>>, vector<1x128xf32>
    %4 = vector.broadcast %3 : vector<1x128xf32> to vector<128x128xf32>
    %5 = arith.addf %2, %4 : vector<128x128xf32>
    %cst_5 = arith.constant 0.000000e+00 : f32
    %6 = vector.broadcast %cst_5 : f32 to vector<128x128xf32>
    %7 = arith.maximumf %5, %6 : vector<128x128xf32>
    %8 = arith.truncf %7 : vector<128x128xf32> to vector<128x128xbf16>
    %c0_6 = arith.constant 0 : index
    %c0_7 = arith.constant 0 : index
    %9 = vector.load %arg4[%c0_6, %c0_7] : memref<128x128xbf16, #tpu.memory_space<vmem>>, vector<128x128xbf16>
    %cst_8 = arith.constant dense<0.000000e+00> : vector<128x128xf32>
    %10 = tpu.matmul %8, %9, %cst_8 {dimension_numbers = #tpu.dot_dimension_numbers<[1], [0], [0], [1], [0, 0, 1, 1], [], []>} : vector<128x128xbf16>, vector<128x128xbf16>, vector<128x128xf32> -> vector<128x128xf32>
    %c0_9 = arith.constant 0 : index
    %c0_10 = arith.constant 0 : index
    %11 = vector.load %arg5[%c0_9, %c0_10] : memref<1x128xf32, #tpu.memory_space<vmem>>, vector<1x128xf32>
    %12 = vector.broadcast %11 : vector<1x128xf32> to vector<128x128xf32>
    %13 = arith.addf %10, %12 : vector<128x128xf32>
    %cst_11 = arith.constant 0.000000e+00 : f32
    %14 = vector.broadcast %cst_11 : f32 to vector<128x128xf32>
    %15 = arith.maximumf %13, %14 : vector<128x128xf32>
    %16 = arith.truncf %15 : vector<128x128xf32> to vector<128x128xbf16>
    %c0_12 = arith.constant 0 : index
    %c0_13 = arith.constant 0 : index
    %17 = vector.load %arg6[%c0_12, %c0_13] : memref<128x128xbf16, #tpu.memory_space<vmem>>, vector<128x128xbf16>
    %cst_14 = arith.constant dense<0.000000e+00> : vector<128x128xf32>
    %18 = tpu.matmul %16, %17, %cst_14 {dimension_numbers = #tpu.dot_dimension_numbers<[1], [0], [0], [1], [0, 0, 1, 1], [], []>} : vector<128x128xbf16>, vector<128x128xbf16>, vector<128x128xf32> -> vector<128x128xf32>
    %c0_15 = arith.constant 0 : index
    %c0_16 = arith.constant 0 : index
    %19 = vector.load %arg7[%c0_15, %c0_16] : memref<1x128xf32, #tpu.memory_space<vmem>>, vector<1x128xf32>
    %20 = vector.broadcast %19 : vector<1x128xf32> to vector<128x128xf32>
    %21 = arith.addf %18, %20 : vector<128x128xf32>
    %22 = arith.truncf %21 : vector<128x128xf32> to vector<128x128xbf16>
    %c0_17 = arith.constant 0 : index
    %c0_18 = arith.constant 0 : index
    %23 = vector.load %arg8[%c0_17, %c0_18] : memref<128x128xbf16, #tpu.memory_space<vmem>>, vector<128x128xbf16>
    tpu.vector_store %arg8[%c0_17, %c0_18], %22 {strides = array<i32>} : memref<128x128xbf16, #tpu.memory_space<vmem>>, vector<128x128xbf16>,
    return
  }
  func.func @transform_0(%arg0: i32) -> (i32, i32) {
    %c0_i32 = arith.constant 0 : i32
    %c0_i32_0 = arith.constant 0 : i32
    return %arg0, %c0_i32 : i32, i32
  }
  func.func @transform_1(%arg0: i32) -> (i32, i32) {
    %c0_i32 = arith.constant 0 : i32
    %c0_i32_0 = arith.constant 0 : i32
    %c0_i32_1 = arith.constant 0 : i32
    return %c0_i32, %c0_i32_0 : i32, i32
  }
  func.func @transform_2(%arg0: i32) -> (i32, i32) {
    %c0_i32 = arith.constant 0 : i32
    %c0_i32_0 = arith.constant 0 : i32
    %c0_i32_1 = arith.constant 0 : i32
    return %c0_i32, %c0_i32_0 : i32, i32
  }
  func.func @transform_3(%arg0: i32) -> (i32, i32) {
    %c0_i32 = arith.constant 0 : i32
    %c0_i32_0 = arith.constant 0 : i32
    %c0_i32_1 = arith.constant 0 : i32
    return %c0_i32, %c0_i32_0 : i32, i32
  }
  func.func @transform_4(%arg0: i32) -> (i32, i32) {
    %c0_i32 = arith.constant 0 : i32
    %c0_i32_0 = arith.constant 0 : i32
    %c0_i32_1 = arith.constant 0 : i32
    return %c0_i32, %c0_i32_0 : i32, i32
  }
  func.func @transform_5(%arg0: i32) -> (i32, i32) {
    %c0_i32 = arith.constant 0 : i32
    %c0_i32_0 = arith.constant 0 : i32
    %c0_i32_1 = arith.constant 0 : i32
    return %c0_i32, %c0_i32_0 : i32, i32
  }
  func.func @transform_6(%arg0: i32) -> (i32, i32) {
    %c0_i32 = arith.constant 0 : i32
    %c0_i32_0 = arith.constant 0 : i32
    %c0_i32_1 = arith.constant 0 : i32
    return %c0_i32, %c0_i32_0 : i32, i32
  }
  func.func @transform_7(%arg0: i32) -> (i32, i32) {
    %c0_i32 = arith.constant 0 : i32
    %c0_i32_0 = arith.constant 0 : i32
    return %arg0, %c0_i32 : i32, i32
  }
}

</mosaic_0001>

<llo_original>
// kernel: tpu_custom_call.1
$region0: #{tpu_custom_call.1}
  #allocation0 [shape = 'u32[]', space=smem, size = 0x4, offset = 0x4, fixed_abs, tag = 'smem constant byte address 0x4 - core index']
  #allocation1 [shape = 'u32[144,128]{1,0:T(1,128)}', space=vmem, size = 0x12000, scoped, tag = 'internal scratch']
  %s0 = inlined_call_operand.vmem [shape: bf16[128,16], index: 0, kind: input, shape index: {}]
  %s1 = inlined_call_operand.vmem [shape: bf16[16,128], index: 1, kind: input, shape index: {}]
  %s2 = inlined_call_operand.vmem [shape: f32[1,128], index: 2, kind: input, shape index: {}]
  %s3 = inlined_call_operand.vmem [shape: bf16[128,128], index: 3, kind: input, shape index: {}]
  %s4 = inlined_call_operand.vmem [shape: f32[1,128], index: 4, kind: input, shape index: {}]
  %s5 = inlined_call_operand.hbm [shape: bf16[128,128], index: 5, kind: input, shape index: {}]
  %s6 = inlined_call_operand.vmem [shape: f32[1,128], index: 6, kind: input, shape index: {}]
  %s7 = inlined_call_operand.hbm [shape: bf16[128,128], index: 7, kind: output, shape index: {}]
  %s8 = sld [smem:[#allocation0]]
  $region42: #{tpu_custom_call.1} parent=0
    _
  %s10 = ssub.s32 1, %s8
  %s11 = scalar_select 0, %s10, %s8
  $region1: #{tpu_custom_call.1} parent=0
    #allocation2 [shape = 'u8[32768]{0}', space=vmem, size = 0x8000, scoped, tag = 'input window, operand 5, single buffered']
    #allocation3 [shape = 's32[1]{0}', space=sflag, size = 0x4, scoped, tag = 'scoped memory for tpu_custom_call.1']
    #allocation4 [shape = 's32[1]{0}', space=sflag, size = 0x4, scoped, tag = 'scoped memory for tpu_custom_call.1']
    #allocation5 [shape = 'u8[32768]{0}', space=vmem, size = 0x8000, scoped, tag = 'output window, operand 0, single buffered']
    %12 = vsyncpa [#allocation3], 0
    %13 = vsyncpa [#allocation4], 0
    // Predicated region
    $region2: #{tpu_custom_call.1} parent=1 // pred_check
      _
    $region3: #{tpu_custom_call.1} parent=1 // pred_check_branch
      %15 = sbr.rel (0) target = $region5
    $region4: #{tpu_custom_call.1} parent=1 // pred_region
      _
    $region5: #{tpu_custom_call.1} parent=1 // pred_fallthru
      _
    // Predicated region
    $region6: #{tpu_custom_call.1} parent=1 // pred_check
      _
    $region7: #{tpu_custom_call.1} parent=1 // pred_check_branch
      %17 = sbr.rel (0) target = $region9
    $region8: #{tpu_custom_call.1} parent=1 // pred_region
      _
    $region9: #{tpu_custom_call.1} parent=1 // pred_fallthru
      _
    // Predicated region
    $region10: #{tpu_custom_call.1} parent=1 // pred_check
      _
    $region11: #{tpu_custom_call.1} parent=1 // pred_check_branch
      %19 = sbr.rel (0) target = $region13
    $region12: #{tpu_custom_call.1} parent=1 // pred_region
      _
    $region13: #{tpu_custom_call.1} parent=1 // pred_fallthru
      _
    // Predicated region
    $region14: #{tpu_custom_call.1} parent=1 // pred_check
      _
    $region15: #{tpu_custom_call.1} parent=1 // pred_check_branch
      %21 = sbr.rel (0) target = $region17
    $region16: #{tpu_custom_call.1} parent=1 // pred_region
      _
    $region17: #{tpu_custom_call.1} parent=1 // pred_fallthru
      _
    // Predicated region
    $region18: #{tpu_custom_call.1} parent=1 // pred_check
      _
    $region19: #{tpu_custom_call.1} parent=1 // pred_check_branch
      %23 = sbr.rel (0) target = $region21
    $region20: #{tpu_custom_call.1} parent=1 // pred_region
      _
    $region21: #{tpu_custom_call.1} parent=1 // pred_fallthru
      _
    // Predicated region
    $region22: #{tpu_custom_call.1} parent=1 // pred_check
      _
    $region23: #{tpu_custom_call.1} parent=1 // pred_check_branch
      %25 = sbr.rel (0) target = $region25
    $region24: #{tpu_custom_call.1} parent=1 // pred_region
      %s27 = ssub.s32 1024, 1024
      %28 = vsyncadd [#allocation3], %s27
      %s29 = sshll.u32 [#allocation2], 4
      %s30 = int_to_ptr.vmem [resolvable:$true] %s29
      %35 = dma.hbm_to_vmem [thread:$0]  %s5, 1024, %s30, [#allocation3], 64, 64, 4
    $region25: #{tpu_custom_call.1} parent=1 // pred_fallthru
      _
    // Predicated region
    $region26: #{tpu_custom_call.1} parent=1 // pred_check
      _
    $region27: #{tpu_custom_call.1} parent=1 // pred_check_branch
      %37 = sbr.rel (0) target = $region29
    $region28: #{tpu_custom_call.1} parent=1 // pred_region
      _
    $region29: #{tpu_custom_call.1} parent=1 // pred_fallthru
      _
    // Predicated region
    $region30: #{tpu_custom_call.1} parent=1 // pred_check
      _
    $region31: #{tpu_custom_call.1} parent=1 // pred_check_branch
      %39 = sbr.rel (0) target = $region33
    $region32: #{tpu_custom_call.1} parent=1 // pred_region
      %40 = dma.done [#allocation3], 1024
    $region33: #{tpu_custom_call.1} parent=1 // pred_fallthru
      _
    %v42 = vld [vmem:[%s0] sm:$0xf]
    %v43 = vld [vmem:[%s0 + $0x4] sm:$0xf]
    %v44 = vld [vmem:[%s0 + $0x8] sm:$0xf]
    %v45 = vld [vmem:[%s0 + $0xc] sm:$0xf]
    %v46 = vld [vmem:[%s0 + $0x10] sm:$0xf]
    %v47 = vld [vmem:[%s0 + $0x14] sm:$0xf]
    %v48 = vld [vmem:[%s0 + $0x18] sm:$0xf]
    %v49 = vld [vmem:[%s0 + $0x1c] sm:$0xf]
    %v50 = vld [vmem:[%s0 + $0x20] sm:$0xf]
    %v51 = vld [vmem:[%s0 + $0x24] sm:$0xf]
    %v52 = vld [vmem:[%s0 + $0x28] sm:$0xf]
    %v53 = vld [vmem:[%s0 + $0x2c] sm:$0xf]
    %v54 = vld [vmem:[%s0 + $0x30] sm:$0xf]
    %v55 = vld [vmem:[%s0 + $0x34] sm:$0xf]
    %v56 = vld [vmem:[%s0 + $0x38] sm:$0xf]
    %v57 = vld [vmem:[%s0 + $0x3c] sm:$0xf]
    %v58 = vld [vmem:[%s1] sm:$0xf]
    %v59 = vld [vmem:[%s1 + $0x4] sm:$0xf]
    %v60 = vld [vmem:[%s2] sm:$0x1]
    %v62 = vlaneseq
    %v63 = vshrl.u32 %v62, 7
    %v64 = vsub.s32 0, %v63
    %v65 = vrot.slane %v60, %v64
    %v83 = vunpack.c.l.b16 %v42
    %v84 = vunpack.c.l.b16 %v43
    %v85 = vunpack.c.l.b16 %v44
    %v86 = vunpack.c.l.b16 %v45
    %v87 = vunpack.c.l.b16 %v46
    %v88 = vunpack.c.l.b16 %v47
    %v89 = vunpack.c.l.b16 %v48
    %v90 = vunpack.c.l.b16 %v49
    %v91 = vunpack.c.l.b16 %v50
    %v92 = vunpack.c.l.b16 %v51
    %v93 = vunpack.c.l.b16 %v52
    %v94 = vunpack.c.l.b16 %v53
    %v95 = vunpack.c.l.b16 %v54
    %v96 = vunpack.c.l.b16 %v55
    %v97 = vunpack.c.l.b16 %v56
    %v98 = vunpack.c.l.b16 %v57
    %v99 = vpack.c.b16 %v84, %v83
    %v100 = vpack.c.b16 %v86, %v85
    %v101 = vpack.c.b16 %v88, %v87
    %v102 = vpack.c.b16 %v90, %v89
    %v103 = vpack.c.b16 %v92, %v91
    %v104 = vpack.c.b16 %v94, %v93
    %v105 = vpack.c.b16 %v96, %v95
    %v106 = vpack.c.b16 %v98, %v97
    %v109 = vunpack.c.l.b16 %v58
    %v110 = vunpack.c.l.b16 %v59
    %v111 = vpack.c.b16 %v110, %v109
    %vm113 = vcmask 130048
    %v115 = vsel %vm113, %v99, 0
    %v118 = vsel %vm113, %v100, 0
    %v121 = vsel %vm113, %v101, 0
    %v124 = vsel %vm113, %v102, 0
    %v127 = vsel %vm113, %v103, 0
    %v130 = vsel %vm113, %v104, 0
    %v133 = vsel %vm113, %v105, 0
    %v136 = vsel %vm113, %v106, 0
    %138 = vmatprep.subr.bf16.mxu0 0
    %139 = vmatpush1.bf16.msra.mxu0 0
    %140 = vmatprep.subr.bf16.mxu0 0
    %141 = vmatpush1.bf16.msra.mxu0 0
    %142 = vmatprep.subr.bf16.mxu0 0
    %143 = vmatpush1.bf16.msra.mxu0 0
    %144 = vmatprep.subr.bf16.mxu0 0
    %145 = vmatpush1.bf16.msra.mxu0 0
    %146 = vmatprep.subr.bf16.mxu0 0
    %147 = vmatpush1.bf16.msra.mxu0 0
    %148 = vmatprep.subr.bf16.mxu0 0
    %149 = vmatpush1.bf16.msra.mxu0 0
    %150 = vmatprep.subr.bf16.mxu0 0
    %151 = vmatpush1.bf16.msra.mxu0 0
    %152 = vmatprep.subr.bf16.mxu0 0
    %153 = vmatpush1.bf16.msra.mxu0 %v111
    %154 = vmatprep.subr.bf16.mxu0 0
    %155 = vmatpush2.bf16.msra.mxu0 0
    %156 = vmatprep.subr.bf16.mxu0 0
    %157 = vmatpush2.bf16.msra.mxu0 0
    %158 = vmatprep.subr.bf16.mxu0 0
    %159 = vmatpush2.bf16.msra.mxu0 0
    %160 = vmatprep.subr.bf16.mxu0 0
    %161 = vmatpush2.bf16.msra.mxu0 0
    %162 = vmatprep.subr.bf16.mxu0 0
    %163 = vmatpush2.bf16.msra.mxu0 0
    %164 = vmatprep.subr.bf16.mxu0 0
    %165 = vmatpush2.bf16.msra.mxu0 0
    %166 = vmatprep.subr.bf16.mxu0 0
    %167 = vmatpush2.bf16.msra.mxu0 0
    %168 = vmatprep.subr.bf16.mxu0 0
    %169 = vmatpush2.bf16.msra.mxu0 0
    %170 = vmatprep.mubr.bf16.mxu0 0
    %171 = vmatmul.mubr.bf16.gmra.mxu0 %v115
    %v172 = vpop.f32.mrf.mxu0
    %v173 = vadd.f32 %v65, %v172
    %v174 = vpop.f32.mrf.mxu0
    %v175 = vpop.f32.mrf.mxu0
    %v176 = vadd.f32 %v65, %v175
    %v177 = vpop.f32.mrf.mxu0
    %178 = vmatprep.mubr.bf16.mxu0 0
    %179 = vmatmul.mubr.bf16.gmra.mxu0 %v118
    %v180 = vpop.f32.mrf.mxu0
    %v181 = vadd.f32 %v65, %v180
    %v182 = vpop.f32.mrf.mxu0
    %v183 = vpop.f32.mrf.mxu0
    %v184 = vadd.f32 %v65, %v183
    %v185 = vpop.f32.mrf.mxu0
    %186 = vmatprep.mubr.bf16.mxu0 0
    %187 = vmatmul.mubr.bf16.gmra.mxu0 %v121
    %v188 = vpop.f32.mrf.mxu0
    %v189 = vadd.f32 %v65, %v188
    %v190 = vpop.f32.mrf.mxu0
    %v191 = vpop.f32.mrf.mxu0
    %v192 = vadd.f32 %v65, %v191
    %v193 = vpop.f32.mrf.mxu0
    %194 = vmatprep.mubr.bf16.mxu0 0
    %195 = vmatmul.mubr.bf16.gmra.mxu0 %v124
    %v196 = vpop.f32.mrf.mxu0
    %v197 = vadd.f32 %v65, %v196
    %v198 = vpop.f32.mrf.mxu0
    %v199 = vpop.f32.mrf.mxu0
    %v200 = vadd.f32 %v65, %v199
    %v201 = vpop.f32.mrf.mxu0
    %202 = vmatprep.mubr.bf16.mxu0 0
    %203 = vmatmul.mubr.bf16.gmra.mxu0 %v127
    %v204 = vpop.f32.mrf.mxu0
    %v205 = vadd.f32 %v65, %v204
    %v206 = vpop.f32.mrf.mxu0
    %v207 = vpop.f32.mrf.mxu0
    %v208 = vadd.f32 %v65, %v207
    %v209 = vpop.f32.mrf.mxu0
    %210 = vmatprep.mubr.bf16.mxu0 0
    %211 = vmatmul.mubr.bf16.gmra.mxu0 %v130
    %v212 = vpop.f32.mrf.mxu0
    %v213 = vadd.f32 %v65, %v212
    %v214 = vpop.f32.mrf.mxu0
    %v215 = vpop.f32.mrf.mxu0
    %v216 = vadd.f32 %v65, %v215
    %v217 = vpop.f32.mrf.mxu0
    %218 = vmatprep.mubr.bf16.mxu0 0
    %219 = vmatmul.mubr.bf16.gmra.mxu0 %v133
    %v220 = vpop.f32.mrf.mxu0
    %v221 = vadd.f32 %v65, %v220
    %v222 = vpop.f32.mrf.mxu0
    %v223 = vpop.f32.mrf.mxu0
    %v224 = vadd.f32 %v65, %v223
    %v225 = vpop.f32.mrf.mxu0
    %226 = vmatprep.mubr.bf16.mxu0 0
    %227 = vmatmul.mubr.bf16.gmra.mxu0 %v136
    %v228 = vpop.f32.mrf.mxu0
    %v229 = vadd.f32 %v65, %v228
    %v230 = vpop.f32.mrf.mxu0
    %v231 = vpop.f32.mrf.mxu0
    %v232 = vadd.f32 %v65, %v231
    %v233 = vpop.f32.mrf.mxu0
    %234 = vdwg.mxu0
    %v235 = vmax.f32 %v173, 0.0
    %v236 = vmax.f32 %v176, 0.0
    %v237 = vmax.f32 %v181, 0.0
    %v238 = vmax.f32 %v184, 0.0
    %v239 = vmax.f32 %v189, 0.0
    %v240 = vmax.f32 %v192, 0.0
    %v241 = vmax.f32 %v197, 0.0
    %v242 = vmax.f32 %v200, 0.0
    %v243 = vmax.f32 %v205, 0.0
    %v244 = vmax.f32 %v208, 0.0
    %v245 = vmax.f32 %v213, 0.0
    %v246 = vmax.f32 %v216, 0.0
    %v247 = vmax.f32 %v221, 0.0
    %v248 = vmax.f32 %v224, 0.0
    %v249 = vmax.f32 %v229, 0.0
    %v250 = vmax.f32 %v232, 0.0
    %v251 = vpack.c.bf16 %v236, %v235
    %v252 = vpack.c.bf16 %v238, %v237
    %v253 = vpack.c.bf16 %v240, %v239
    %v254 = vpack.c.bf16 %v242, %v241
    %v255 = vpack.c.bf16 %v244, %v243
    %v256 = vpack.c.bf16 %v246, %v245
    %v257 = vpack.c.bf16 %v248, %v247
    %v258 = vpack.c.bf16 %v250, %v249
    %v259 = vld [vmem:[%s3] sm:$0xf]
    %v260 = vld [vmem:[%s3 + $0x4] sm:$0xf]
    %v261 = vld [vmem:[%s3 + $0x8] sm:$0xf]
    %v262 = vld [vmem:[%s3 + $0xc] sm:$0xf]
    %v263 = vld [vmem:[%s3 + $0x10] sm:$0xf]
    %v264 = vld [vmem:[%s3 + $0x14] sm:$0xf]
    %v265 = vld [vmem:[%s3 + $0x18] sm:$0xf]
    %v266 = vld [vmem:[%s3 + $0x1c] sm:$0xf]
    %v267 = vld [vmem:[%s3 + $0x20] sm:$0xf]
    %v268 = vld [vmem:[%s3 + $0x24] sm:$0xf]
    %v269 = vld [vmem:[%s3 + $0x28] sm:$0xf]
    %v270 = vld [vmem:[%s3 + $0x2c] sm:$0xf]
    %v271 = vld [vmem:[%s3 + $0x30] sm:$0xf]
    %v272 = vld [vmem:[%s3 + $0x34] sm:$0xf]
    %v273 = vld [vmem:[%s3 + $0x38] sm:$0xf]
    %v274 = vld [vmem:[%s3 + $0x3c] sm:$0xf]
    %v275 = vld [vmem:[%s4] sm:$0x1]
    %v277 = vlaneseq
    %v278 = vshrl.u32 %v277, 7
    %v279 = vsub.s32 0, %v278
    %v280 = vrot.slane %v275, %v279
    %v298 = vunpack.c.l.b16 %v259
    %v299 = vunpack.c.l.b16 %v260
    %v300 = vunpack.c.l.b16 %v261
    %v301 = vunpack.c.l.b16 %v262
    %v302 = vunpack.c.l.b16 %v263
    %v303 = vunpack.c.l.b16 %v264
    %v304 = vunpack.c.l.b16 %v265
    %v305 = vunpack.c.l.b16 %v266
    %v306 = vunpack.c.l.b16 %v267
    %v307 = vunpack.c.l.b16 %v268
    %v308 = vunpack.c.l.b16 %v269
    %v309 = vunpack.c.l.b16 %v270
    %v310 = vunpack.c.l.b16 %v271
    %v311 = vunpack.c.l.b16 %v272
    %v312 = vunpack.c.l.b16 %v273
    %v313 = vunpack.c.l.b16 %v274
    %v314 = vpack.c.b16 %v299, %v298
    %v315 = vpack.c.b16 %v301, %v300
    %v316 = vpack.c.b16 %v303, %v302
    %v317 = vpack.c.b16 %v305, %v304
    %v318 = vpack.c.b16 %v307, %v306
    %v319 = vpack.c.b16 %v309, %v308
    %v320 = vpack.c.b16 %v311, %v310
    %v321 = vpack.c.b16 %v313, %v312
    %330 = vmatprep.subr.bf16.mxu0 0
    %331 = vmatpush1.bf16.msra.mxu0 %v321
    %332 = vmatprep.subr.bf16.mxu0 0
    %333 = vmatpush1.bf16.msra.mxu0 %v320
    %334 = vmatprep.subr.bf16.mxu0 0
    %335 = vmatpush1.bf16.msra.mxu0 %v319
    %336 = vmatprep.subr.bf16.mxu0 0
    %337 = vmatpush1.bf16.msra.mxu0 %v318
    %338 = vmatprep.subr.bf16.mxu0 0
    %339 = vmatpush1.bf16.msra.mxu0 %v317
    %340 = vmatprep.subr.bf16.mxu0 0
    %341 = vmatpush1.bf16.msra.mxu0 %v316
    %342 = vmatprep.subr.bf16.mxu0 0
    %343 = vmatpush1.bf16.msra.mxu0 %v315
    %344 = vmatprep.subr.bf16.mxu0 0
    %345 = vmatpush1.bf16.msra.mxu0 %v314
    %346 = vmatprep.subr.bf16.mxu0 0
    %347 = vmatpush2.bf16.msra.mxu0 0
    %348 = vmatprep.subr.bf16.mxu0 0
    %349 = vmatpush2.bf16.msra.mxu0 0
    %350 = vmatprep.subr.bf16.mxu0 0
    %351 = vmatpush2.bf16.msra.mxu0 0
    %352 = vmatprep.subr.bf16.mxu0 0
    %353 = vmatpush2.bf16.msra.mxu0 0
    %354 = vmatprep.subr.bf16.mxu0 0
    %355 = vmatpush2.bf16.msra.mxu0 0
    %356 = vmatprep.subr.bf16.mxu0 0
    %357 = vmatpush2.bf16.msra.mxu0 0
    %358 = vmatprep.subr.bf16.mxu0 0
    %359 = vmatpush2.bf16.msra.mxu0 0
    %360 = vmatprep.subr.bf16.mxu0 0
    %361 = vmatpush2.bf16.msra.mxu0 0
    %362 = vmatprep.mubr.bf16.mxu0 0
    %363 = vmatmul.mubr.bf16.gmra.mxu0 %v251
    %v364 = vpop.f32.mrf.mxu0
    %v365 = vadd.f32 %v280, %v364
    %v366 = vpop.f32.mrf.mxu0
    %v367 = vpop.f32.mrf.mxu0
    %v368 = vadd.f32 %v280, %v367
    %v369 = vpop.f32.mrf.mxu0
    %370 = vmatprep.mubr.bf16.mxu0 0
    %371 = vmatmul.mubr.bf16.gmra.mxu0 %v252
    %v372 = vpop.f32.mrf.mxu0
    %v373 = vadd.f32 %v280, %v372
    %v374 = vpop.f32.mrf.mxu0
    %v375 = vpop.f32.mrf.mxu0
    %v376 = vadd.f32 %v280, %v375
    %v377 = vpop.f32.mrf.mxu0
    %378 = vmatprep.mubr.bf16.mxu0 0
    %379 = vmatmul.mubr.bf16.gmra.mxu0 %v253
    %v380 = vpop.f32.mrf.mxu0
    %v381 = vadd.f32 %v280, %v380
    %v382 = vpop.f32.mrf.mxu0
    %v383 = vpop.f32.mrf.mxu0
    %v384 = vadd.f32 %v280, %v383
    %v385 = vpop.f32.mrf.mxu0
    %386 = vmatprep.mubr.bf16.mxu0 0
    %387 = vmatmul.mubr.bf16.gmra.mxu0 %v254
    %v388 = vpop.f32.mrf.mxu0
    %v389 = vadd.f32 %v280, %v388
    %v390 = vpop.f32.mrf.mxu0
    %v391 = vpop.f32.mrf.mxu0
    %v392 = vadd.f32 %v280, %v391
    %v393 = vpop.f32.mrf.mxu0
    %394 = vmatprep.mubr.bf16.mxu0 0
    %395 = vmatmul.mubr.bf16.gmra.mxu0 %v255
    %v396 = vpop.f32.mrf.mxu0
    %v397 = vadd.f32 %v280, %v396
    %v398 = vpop.f32.mrf.mxu0
    %v399 = vpop.f32.mrf.mxu0
    %v400 = vadd.f32 %v280, %v399
    %v401 = vpop.f32.mrf.mxu0
    %402 = vmatprep.mubr.bf16.mxu0 0
    %403 = vmatmul.mubr.bf16.gmra.mxu0 %v256
    %v404 = vpop.f32.mrf.mxu0
    %v405 = vadd.f32 %v280, %v404
    %v406 = vpop.f32.mrf.mxu0
    %v407 = vpop.f32.mrf.mxu0
    %v408 = vadd.f32 %v280, %v407
    %v409 = vpop.f32.mrf.mxu0
    %410 = vmatprep.mubr.bf16.mxu0 0
    %411 = vmatmul.mubr.bf16.gmra.mxu0 %v257
    %v412 = vpop.f32.mrf.mxu0
    %v413 = vadd.f32 %v280, %v412
    %v414 = vpop.f32.mrf.mxu0
    %v415 = vpop.f32.mrf.mxu0
    %v416 = vadd.f32 %v280, %v415
    %v417 = vpop.f32.mrf.mxu0
    %418 = vmatprep.mubr.bf16.mxu0 0
    %419 = vmatmul.mubr.bf16.gmra.mxu0 %v258
    %v420 = vpop.f32.mrf.mxu0
    %v421 = vadd.f32 %v280, %v420
    %v422 = vpop.f32.mrf.mxu0
    %v423 = vpop.f32.mrf.mxu0
    %v424 = vadd.f32 %v280, %v423
    %v425 = vpop.f32.mrf.mxu0
    %426 = vdwg.mxu0
    %v427 = vmax.f32 %v365, 0.0
    %v428 = vmax.f32 %v368, 0.0
    %v429 = vmax.f32 %v373, 0.0
    %v430 = vmax.f32 %v376, 0.0
    %v431 = vmax.f32 %v381, 0.0
    %v432 = vmax.f32 %v384, 0.0
    %v433 = vmax.f32 %v389, 0.0
    %v434 = vmax.f32 %v392, 0.0
    %v435 = vmax.f32 %v397, 0.0
    %v436 = vmax.f32 %v400, 0.0
    %v437 = vmax.f32 %v405, 0.0
    %v438 = vmax.f32 %v408, 0.0
    %v439 = vmax.f32 %v413, 0.0
    %v440 = vmax.f32 %v416, 0.0
    %v441 = vmax.f32 %v421, 0.0
    %v442 = vmax.f32 %v424, 0.0
    %v443 = vpack.c.bf16 %v428, %v427
    %v444 = vpack.c.bf16 %v430, %v429
    %v445 = vpack.c.bf16 %v432, %v431
    %v446 = vpack.c.bf16 %v434, %v433
    %v447 = vpack.c.bf16 %v436, %v435
    %v448 = vpack.c.bf16 %v438, %v437
    %v449 = vpack.c.bf16 %v440, %v439
    %v450 = vpack.c.bf16 %v442, %v441
    %v451 = vld [vmem:[#allocation2] sm:$0xf]
    %v452 = vld [vmem:[#allocation2 + $0x4] sm:$0xf]
    %v453 = vld [vmem:[#allocation2 + $0x8] sm:$0xf]
    %v454 = vld [vmem:[#allocation2 + $0xc] sm:$0xf]
    %v455 = vld [vmem:[#allocation2 + $0x10] sm:$0xf]
    %v456 = vld [vmem:[#allocation2 + $0x14] sm:$0xf]
    %v457 = vld [vmem:[#allocation2 + $0x18] sm:$0xf]
    %v458 = vld [vmem:[#allocation2 + $0x1c] sm:$0xf]
    %v459 = vld [vmem:[#allocation2 + $0x20] sm:$0xf]
    %v460 = vld [vmem:[#allocation2 + $0x24] sm:$0xf]
    %v461 = vld [vmem:[#allocation2 + $0x28] sm:$0xf]
    %v462 = vld [vmem:[#allocation2 + $0x2c] sm:$0xf]
    %v463 = vld [vmem:[#allocation2 + $0x30] sm:$0xf]
    %v464 = vld [vmem:[#allocation2 + $0x34] sm:$0xf]
    %v465 = vld [vmem:[#allocation2 + $0x38] sm:$0xf]
    %v466 = vld [vmem:[#allocation2 + $0x3c] sm:$0xf]
    %v467 = vld [vmem:[%s6] sm:$0x1]
    %v469 = vlaneseq
    %v470 = vshrl.u32 %v469, 7
    %v471 = vsub.s32 0, %v470
    %v472 = vrot.slane %v467, %v471
    %v490 = vunpack.c.l.b16 %v451
    %v491 = vunpack.c.l.b16 %v452
    %v492 = vunpack.c.l.b16 %v453
    %v493 = vunpack.c.l.b16 %v454
    %v494 = vunpack.c.l.b16 %v455
    %v495 = vunpack.c.l.b16 %v456
    %v496 = vunpack.c.l.b16 %v457
    %v497 = vunpack.c.l.b16 %v458
    %v498 = vunpack.c.l.b16 %v459
    %v499 = vunpack.c.l.b16 %v460
    %v500 = vunpack.c.l.b16 %v461
    %v501 = vunpack.c.l.b16 %v462
    %v502 = vunpack.c.l.b16 %v463
    %v503 = vunpack.c.l.b16 %v464
    %v504 = vunpack.c.l.b16 %v465
    %v505 = vunpack.c.l.b16 %v466
    %v506 = vpack.c.b16 %v491, %v490
    %v507 = vpack.c.b16 %v493, %v492
    %v508 = vpack.c.b16 %v495, %v494
    %v509 = vpack.c.b16 %v497, %v496
    %v510 = vpack.c.b16 %v499, %v498
    %v511 = vpack.c.b16 %v501, %v500
    %v512 = vpack.c.b16 %v503, %v502
    %v513 = vpack.c.b16 %v505, %v504
    %522 = vmatprep.subr.bf16.mxu0 0
    %523 = vmatpush1.bf16.msra.mxu0 %v513
    %524 = vmatprep.subr.bf16.mxu0 0
    %525 = vmatpush1.bf16.msra.mxu0 %v512
    %526 = vmatprep.subr.bf16.mxu0 0
    %527 = vmatpush1.bf16.msra.mxu0 %v511
    %528 = vmatprep.subr.bf16.mxu0 0
    %529 = vmatpush1.bf16.msra.mxu0 %v510
    %530 = vmatprep.subr.bf16.mxu0 0
    %531 = vmatpush1.bf16.msra.mxu0 %v509
    %532 = vmatprep.subr.bf16.mxu0 0
    %533 = vmatpush1.bf16.msra.mxu0 %v508
    %534 = vmatprep.subr.bf16.mxu0 0
    %535 = vmatpush1.bf16.msra.mxu0 %v507
    %536 = vmatprep.subr.bf16.mxu0 0
    %537 = vmatpush1.bf16.msra.mxu0 %v506
    %538 = vmatprep.subr.bf16.mxu0 0
    %539 = vmatpush2.bf16.msra.mxu0 0
    %540 = vmatprep.subr.bf16.mxu0 0
    %541 = vmatpush2.bf16.msra.mxu0 0
    %542 = vmatprep.subr.bf16.mxu0 0
    %543 = vmatpush2.bf16.msra.mxu0 0
    %544 = vmatprep.subr.bf16.mxu0 0
    %545 = vmatpush2.bf16.msra.mxu0 0
    %546 = vmatprep.subr.bf16.mxu0 0
    %547 = vmatpush2.bf16.msra.mxu0 0
    %548 = vmatprep.subr.bf16.mxu0 0
    %549 = vmatpush2.bf16.msra.mxu0 0
    %550 = vmatprep.subr.bf16.mxu0 0
    %551 = vmatpush2.bf16.msra.mxu0 0
    %552 = vmatprep.subr.bf16.mxu0 0
    %553 = vmatpush2.bf16.msra.mxu0 0
    %554 = vmatprep.mubr.bf16.mxu0 0
    %555 = vmatmul.mubr.bf16.gmra.mxu0 %v443
    %v556 = vpop.f32.mrf.mxu0
    %v557 = vadd.f32 %v472, %v556
    %v558 = vpop.f32.mrf.mxu0
    %v559 = vpop.f32.mrf.mxu0
    %v560 = vadd.f32 %v472, %v559
    %v561 = vpop.f32.mrf.mxu0
    %562 = vmatprep.mubr.bf16.mxu0 0
    %563 = vmatmul.mubr.bf16.gmra.mxu0 %v444
    %v564 = vpop.f32.mrf.mxu0
    %v565 = vadd.f32 %v472, %v564
    %v566 = vpop.f32.mrf.mxu0
    %v567 = vpop.f32.mrf.mxu0
    %v568 = vadd.f32 %v472, %v567
    %v569 = vpop.f32.mrf.mxu0
    %570 = vmatprep.mubr.bf16.mxu0 0
    %571 = vmatmul.mubr.bf16.gmra.mxu0 %v445
    %v572 = vpop.f32.mrf.mxu0
    %v573 = vadd.f32 %v472, %v572
    %v574 = vpop.f32.mrf.mxu0
    %v575 = vpop.f32.mrf.mxu0
    %v576 = vadd.f32 %v472, %v575
    %v577 = vpop.f32.mrf.mxu0
    %578 = vmatprep.mubr.bf16.mxu0 0
    %579 = vmatmul.mubr.bf16.gmra.mxu0 %v446
    %v580 = vpop.f32.mrf.mxu0
    %v581 = vadd.f32 %v472, %v580
    %v582 = vpop.f32.mrf.mxu0
    %v583 = vpop.f32.mrf.mxu0
    %v584 = vadd.f32 %v472, %v583
    %v585 = vpop.f32.mrf.mxu0
    %586 = vmatprep.mubr.bf16.mxu0 0
    %587 = vmatmul.mubr.bf16.gmra.mxu0 %v447
    %v588 = vpop.f32.mrf.mxu0
    %v589 = vadd.f32 %v472, %v588
    %v590 = vpop.f32.mrf.mxu0
    %v591 = vpop.f32.mrf.mxu0
    %v592 = vadd.f32 %v472, %v591
    %v593 = vpop.f32.mrf.mxu0
    %594 = vmatprep.mubr.bf16.mxu0 0
    %595 = vmatmul.mubr.bf16.gmra.mxu0 %v448
    %v596 = vpop.f32.mrf.mxu0
    %v597 = vadd.f32 %v472, %v596
    %v598 = vpop.f32.mrf.mxu0
    %v599 = vpop.f32.mrf.mxu0
    %v600 = vadd.f32 %v472, %v599
    %v601 = vpop.f32.mrf.mxu0
    %602 = vmatprep.mubr.bf16.mxu0 0
    %603 = vmatmul.mubr.bf16.gmra.mxu0 %v449
    %v604 = vpop.f32.mrf.mxu0
    %v605 = vadd.f32 %v472, %v604
    %v606 = vpop.f32.mrf.mxu0
    %v607 = vpop.f32.mrf.mxu0
    %v608 = vadd.f32 %v472, %v607
    %v609 = vpop.f32.mrf.mxu0
    %610 = vmatprep.mubr.bf16.mxu0 0
    %611 = vmatmul.mubr.bf16.gmra.mxu0 %v450
    %v612 = vpop.f32.mrf.mxu0
    %v613 = vadd.f32 %v472, %v612
    %v614 = vpop.f32.mrf.mxu0
    %v615 = vpop.f32.mrf.mxu0
    %v616 = vadd.f32 %v472, %v615
    %v617 = vpop.f32.mrf.mxu0
    %618 = vdwg.mxu0
    %v619 = vpack.c.bf16 %v560, %v557
    %v620 = vpack.c.bf16 %v568, %v565
    %v621 = vpack.c.bf16 %v576, %v573
    %v622 = vpack.c.bf16 %v584, %v581
    %v623 = vpack.c.bf16 %v592, %v589
    %v624 = vpack.c.bf16 %v600, %v597
    %v625 = vpack.c.bf16 %v608, %v605
    %v626 = vpack.c.bf16 %v616, %v613
    %v635 = vunpack.c.l.b16 %v619
    %v636 = vunpack.c.h.b16 %v619
    %v637 = vunpack.c.l.b16 %v620
    %v638 = vunpack.c.h.b16 %v620
    %v639 = vunpack.c.l.b16 %v621
    %v640 = vunpack.c.h.b16 %v621
    %v641 = vunpack.c.l.b16 %v622
    %v642 = vunpack.c.h.b16 %v622
    %v643 = vunpack.c.l.b16 %v623
    %v644 = vunpack.c.h.b16 %v623
    %v645 = vunpack.c.l.b16 %v624
    %v646 = vunpack.c.h.b16 %v624
    %v647 = vunpack.c.l.b16 %v625
    %v648 = vunpack.c.h.b16 %v625
    %v649 = vunpack.c.l.b16 %v626
    %v650 = vunpack.c.h.b16 %v626
    %v651 = vpack.c.b16 %v635, %v635
    %v652 = vpack.c.b16 %v636, %v636
    %v653 = vpack.c.b16 %v637, %v637
    %v654 = vpack.c.b16 %v638, %v638
    %v655 = vpack.c.b16 %v639, %v639
    %v656 = vpack.c.b16 %v640, %v640
    %v657 = vpack.c.b16 %v641, %v641
    %v658 = vpack.c.b16 %v642, %v642
    %v659 = vpack.c.b16 %v643, %v643
    %v660 = vpack.c.b16 %v644, %v644
    %v661 = vpack.c.b16 %v645, %v645
    %v662 = vpack.c.b16 %v646, %v646
    %v663 = vpack.c.b16 %v647, %v647
    %v664 = vpack.c.b16 %v648, %v648
    %v665 = vpack.c.b16 %v649, %v649
    %v666 = vpack.c.b16 %v650, %v650
    %683 = vst [vmem:[#allocation5] sm:$0xf] %v651
    %684 = vst [vmem:[#allocation5 + $0x4] sm:$0xf] %v652
    %685 = vst [vmem:[#allocation5 + $0x8] sm:$0xf] %v653
    %686 = vst [vmem:[#allocation5 + $0xc] sm:$0xf] %v654
    %687 = vst [vmem:[#allocation5 + $0x10] sm:$0xf] %v655
    %688 = vst [vmem:[#allocation5 + $0x14] sm:$0xf] %v656
    %689 = vst [vmem:[#allocation5 + $0x18] sm:$0xf] %v657
    %690 = vst [vmem:[#allocation5 + $0x1c] sm:$0xf] %v658
    %691 = vst [vmem:[#allocation5 + $0x20] sm:$0xf] %v659
    %692 = vst [vmem:[#allocation5 + $0x24] sm:$0xf] %v660
    %693 = vst [vmem:[#allocation5 + $0x28] sm:$0xf] %v661
    %694 = vst [vmem:[#allocation5 + $0x2c] sm:$0xf] %v662
    %695 = vst [vmem:[#allocation5 + $0x30] sm:$0xf] %v663
    %696 = vst [vmem:[#allocation5 + $0x34] sm:$0xf] %v664
    %697 = vst [vmem:[#allocation5 + $0x38] sm:$0xf] %v665
    %698 = vst [vmem:[#allocation5 + $0x3c] sm:$0xf] %v666
    // Predicated region
    $region34: #{tpu_custom_call.1} parent=1 // pred_check
      _
    $region35: #{tpu_custom_call.1} parent=1 // pred_check_branch
      %700 = sbr.rel (0) target = $region37
    $region36: #{tpu_custom_call.1} parent=1 // pred_region
      %s702 = ssub.s32 1024, 1024
      %703 = vsyncadd [#allocation4], %s702
      %s704 = sshll.u32 [#allocation5], 4
      %s705 = int_to_ptr.vmem [resolvable:$true] %s704
      %710 = dma.vmem_to_hbm [thread:$0]  %s705, 1024, %s7, [#allocation4], 64, 64, 4
    $region37: #{tpu_custom_call.1} parent=1 // pred_fallthru
      _
    // Predicated region
    $region38: #{tpu_custom_call.1} parent=1 // pred_check
      _
    $region39: #{tpu_custom_call.1} parent=1 // pred_check_branch
      %712 = sbr.rel (0) target = $region41
    $region40: #{tpu_custom_call.1} parent=1 // pred_region
      %713 = dma.done [#allocation4], 1024
    $region41: #{tpu_custom_call.1} parent=1 // pred_fallthru
      _
    %714 = vsyncpa [#allocation3], 1
    %715 = vsyncpa [#allocation4], 1

</llo_original>
